<compile_context>
chip_gen: v5e
topology: v5e:2x2
jax: 0.10.0
libtpu: 0.0.40
codegen_flags: <defaults>
</compile_context>

<pallas_src>
import jax
import jax.numpy as jnp
from jax.experimental import pallas as pl
from jax.experimental.pallas import tpu as pltpu


def _round_up(x, m):
    return ((x + m - 1) // m) * m


def _choose_bm(batch, tm):
    """Batch-tile rows per grid step.

    Single block (== batch rounded to 8) when it fits; otherwise 128-row-quantized
    blocks balanced across cdiv(B, tm) steps, with >=2 steps for batches >=2048 so
    the two v7x TensorCores both get work.
    """
    b8 = _round_up(batch, 8)
    if b8 <= tm and b8 < 2048:
        return b8                                   # one exact block (multiple of 8)
    tm128 = max(128, (tm // 128) * 128)             # multi-block tiles in 128-row quanta
    n = pl.cdiv(b8, tm128)
    if b8 >= 2048:
        n = max(n, 2)                               # v7x: keep both TensorCores busy
    return min(tm128, _round_up(pl.cdiv(b8, n), 128))


def critic_kernel(x_ref, w1_ref, b1_ref, w2_ref, b2_ref, w3_ref, b3_ref, q_ref):
    # fc1: single fused matmul over [state|action] (bf16 MXU, f32 accumulate) + ReLU.
    h1 = jnp.dot(x_ref[...], w1_ref[...],
                 preferred_element_type=jnp.float32) + b1_ref[...]
    h1 = jnp.maximum(h1, 0.0)

    # fc2 + ReLU.
    h2 = jnp.dot(h1.astype(jnp.bfloat16), w2_ref[...],
                 preferred_element_type=jnp.float32) + b2_ref[...]
    h2 = jnp.maximum(h2, 0.0)

    # fc3 (out_features == 1): VPU multiply + XLU lane reduce; scalar bias in SMEM.
    # Result stored lane-dense as a (1, bm) row (unmasked stores).
    q = jnp.sum(h2 * w3_ref[...], axis=-1) + b3_ref[0]        # (bm,) f32
    q_ref[...] = q[None, :].astype(q_ref.dtype)


def critic_forward(state, action, packed_params, *, tm=1024):
    """Q(s, a) for a batch.  packed_params from pack_critic_params()."""
    w1, b1, w2, b2, w3, b3 = packed_params
    B = state.shape[0]
    din = w1.shape[0]                       # state_dim + action_dim
    H = w2.shape[0]

    # Single fused fc1 LHS: [state | action] -> bf16 (one input pipeline, bf16 HBM
    # traffic).  The concat write is ~2*din bytes/row and fuses upstream.
    x = jnp.concatenate([state, action], axis=1).astype(jnp.bfloat16)

    bm = _choose_bm(B, tm)
    nb = pl.cdiv(B, bm)                     # boundary block masked by Pallas; no padding

    rows = nb * bm
    flops = 2 * rows * (din * H + H * H + H)
    bytes_accessed = (B * din * 2                              # bf16 inputs
                      + din * H * 2 + H * H * 2                # bf16 weights
                      + 3 * H * 4 + 4                          # biases + w3 row + b3
                      + rows * 4)                              # f32 output slab

    pinned = lambda shape: pl.BlockSpec(shape, lambda i: (0, 0))

    out = pl.pallas_call(
        critic_kernel,
        out_shape=jax.ShapeDtypeStruct((1, rows), jnp.float32),
        grid=(nb,),
        in_specs=[
            pl.BlockSpec((bm, din), lambda i: (i, 0)),          # [state|action] tile
            pinned((din, H)),                                   # w1 (VMEM-resident)
            pinned((1, H)),                                     # b1
            pinned((H, H)),                                     # w2
            pinned((1, H)),                                     # b2
            pinned((1, H)),                                     # w3 row
            pl.BlockSpec(memory_space=pltpu.MemorySpace.SMEM),  # b3 scalar
        ],
        out_specs=pl.BlockSpec((1, bm), lambda i: (0, i)),      # lane-dense q row
        compiler_params=pltpu.CompilerParams(
            dimension_semantics=("parallel",)),
        cost_estimate=pl.CostEstimate(
            flops=int(flops), transcendentals=0,
            bytes_accessed=int(bytes_accessed)),
    )(x, w1, b1, w2, b2, w3, b3)

    return out[0, :B][:, None]


def init_critic_params(key, state_dim, action_dim, hidden_size=128):
    """Mirrors nn.Linear's U(-1/sqrt(fan_in), 1/sqrt(fan_in)) init, f32 master copy.

    Weights stored as (in, out) = transpose of PyTorch's (out, in); fc1 is stored
    already stacked over [state; action] so the kernel needs a single matmul.
    """
    def linear(k, fan_in, fan_out):
        kw, kb = jax.random.split(k)
        bound = 1.0 / jnp.sqrt(fan_in)
        w = jax.random.uniform(kw, (fan_in, fan_out), jnp.float32, -bound, bound)
        b = jax.random.uniform(kb, (fan_out,), jnp.float32, -bound, bound)
        return w, b

    k1, k2, k3 = jax.random.split(key, 3)
    w1, b1 = linear(k1, state_dim + action_dim, hidden_size)    # (sd+ad, H)
    w2, b2 = linear(k2, hidden_size, hidden_size)               # (H, H)
    w3, b3 = linear(k3, hidden_size, 1)                         # (H, 1)
    return (w1, b1, w2, b2, w3, b3)


def pack_critic_params(params_f32):
    """One-time (hoisted out of the forward): bf16 MXU weights, shaped f32 biases."""
    w1, b1, w2, b2, w3, b3 = params_f32
    return (w1.astype(jnp.bfloat16),
            b1.reshape(1, -1).astype(jnp.float32),
            w2.astype(jnp.bfloat16),
            b2.reshape(1, -1).astype(jnp.float32),
            w3.reshape(1, -1).astype(jnp.float32),   # fc3 as a (1, H) row
            b3.reshape(1,).astype(jnp.float32))      # SMEM scalar


def critic_reference(state, action, params_f32):
    """Pure-JAX f32 reference of the PyTorch forward."""
    w1, b1, w2, b2, w3, b3 = params_f32
    x = jnp.concatenate([state, action], axis=1)
    x = jax.nn.relu(x @ w1 + b1)
    x = jax.nn.relu(x @ w2 + b2)
    return x @ w3 + b3


if __name__ == "__main__":
    state_dim, action_dim, hidden_size = 8, 4, 128

    key = jax.random.PRNGKey(0)
    kp, ks, ka = jax.random.split(key, 3)
    params = init_critic_params(kp, state_dim, action_dim, hidden_size)
    packed = pack_critic_params(params)     # bf16 casts done once, not per call

    # Case 1: small batch, single grid step.
    batch = 8
    state = jax.random.normal(ks, (batch, state_dim), jnp.float32)
    action = jax.random.normal(ka, (batch, action_dim), jnp.float32)
    q = jax.block_until_ready(critic_forward(state, action, packed))
    q_ref = critic_reference(state, action, params)
    assert q.shape == (batch, 1), q.shape
    # bf16 MXU operands -> loosened tolerance vs. the f32 reference.
    assert jnp.allclose(q, q_ref, atol=5e-2, rtol=5e-2), "mismatch vs reference"

    # Case 2: multi-step grid with a masked boundary block (no padding to tile size).
    batch2 = 300
    ks2, ka2 = jax.random.split(jax.random.PRNGKey(1))
    state2 = jax.random.normal(ks2, (batch2, state_dim), jnp.float32)
    action2 = jax.random.normal(ka2, (batch2, action_dim), jnp.float32)
    q2 = jax.block_until_ready(critic_forward(state2, action2, packed, tm=128))
    q2_ref = critic_reference(state2, action2, params)
    assert q2.shape == (batch2, 1), q2.shape
    assert jnp.allclose(q2, q2_ref, atol=5e-2, rtol=5e-2), "mismatch vs reference (tiled)"

    print("KERNEL_OK")
</pallas_src>

<mosaic_0001>
module attributes {stable_mosaic.version = 11 : i64} {
  func.func @critic_kernel(%arg0: i32, %arg1: memref<8x12xbf16, #tpu.memory_space<vmem>>, %arg2: memref<12x128xbf16, #tpu.memory_space<vmem>>, %arg3: memref<1x128xf32, #tpu.memory_space<vmem>>, %arg4: memref<128x128xbf16, #tpu.memory_space<vmem>>, %arg5: memref<1x128xf32, #tpu.memory_space<vmem>>, %arg6: memref<1x128xf32, #tpu.memory_space<vmem>>, %arg7: memref<1xf32, #tpu.memory_space<smem>>, %arg8: memref<1x8xf32, #tpu.memory_space<vmem>>) attributes {dimension_semantics = [#tpu.dimension_semantics<parallel>], iteration_bounds = array<i64: 1>, scalar_prefetch = 0 : i64, scratch_operands = 0 : i64, tpu.core_type = #tpu.core_type<tc>, window_params = [{transform_indices = @transform_0, window_bounds = array<i64: 8, 12>}, {pipeline_mode = #tpu.pipeline_mode<synchronous>, transform_indices = @transform_1, window_bounds = array<i64: 12, 128>}, {pipeline_mode = #tpu.pipeline_mode<synchronous>, transform_indices = @transform_2, window_bounds = array<i64: 1, 128>}, {pipeline_mode = #tpu.pipeline_mode<synchronous>, transform_indices = @transform_3, window_bounds = array<i64: 128, 128>}, {pipeline_mode = #tpu.pipeline_mode<synchronous>, transform_indices = @transform_4, window_bounds = array<i64: 1, 128>}, {pipeline_mode = #tpu.pipeline_mode<synchronous>, transform_indices = @transform_5, window_bounds = array<i64: 1, 128>}, {transform_indices = @transform_6, window_bounds = array<i64: 1>}, {transform_indices = @transform_7, window_bounds = array<i64: 1, 8>}]} {
    %c0 = arith.constant 0 : index
    %c0_0 = arith.constant 0 : index
    %0 = vector.load %arg1[%c0, %c0_0] : memref<8x12xbf16, #tpu.memory_space<vmem>>, vector<8x12xbf16>
    %c0_1 = arith.constant 0 : index
    %c0_2 = arith.constant 0 : index
    %1 = vector.load %arg2[%c0_1, %c0_2] : memref<12x128xbf16, #tpu.memory_space<vmem>>, vector<12x128xbf16>
    %cst = arith.constant dense<0.000000e+00> : vector<8x128xf32>
    %2 = tpu.matmul %0, %1, %cst {dimension_numbers = #tpu.dot_dimension_numbers<[1], [0], [0], [1], [0, 0, 1, 1], [], []>} : vector<8x12xbf16>, vector<12x128xbf16>, vector<8x128xf32> -> vector<8x128xf32>
    %c0_3 = arith.constant 0 : index
    %c0_4 = arith.constant 0 : index
    %3 = vector.load %arg3[%c0_3, %c0_4] : memref<1x128xf32, #tpu.memory_space<vmem>>, vector<1x128xf32>
    %4 = vector.broadcast %3 : vector<1x128xf32> to vector<8x128xf32>
    %5 = arith.addf %2, %4 : vector<8x128xf32>
    %cst_5 = arith.constant 0.000000e+00 : f32
    %6 = vector.broadcast %cst_5 : f32 to vector<8x128xf32>
    %7 = arith.maximumf %5, %6 : vector<8x128xf32>
    %8 = arith.truncf %7 : vector<8x128xf32> to vector<8x128xbf16>
    %c0_6 = arith.constant 0 : index
    %c0_7 = arith.constant 0 : index
    %9 = vector.load %arg4[%c0_6, %c0_7] : memref<128x128xbf16, #tpu.memory_space<vmem>>, vector<128x128xbf16>
    %cst_8 = arith.constant dense<0.000000e+00> : vector<8x128xf32>
    %10 = tpu.matmul %8, %9, %cst_8 {dimension_numbers = #tpu.dot_dimension_numbers<[1], [0], [0], [1], [0, 0, 1, 1], [], []>} : vector<8x128xbf16>, vector<128x128xbf16>, vector<8x128xf32> -> vector<8x128xf32>
    %c0_9 = arith.constant 0 : index
    %c0_10 = arith.constant 0 : index
    %11 = vector.load %arg5[%c0_9, %c0_10] : memref<1x128xf32, #tpu.memory_space<vmem>>, vector<1x128xf32>
    %12 = vector.broadcast %11 : vector<1x128xf32> to vector<8x128xf32>
    %13 = arith.addf %10, %12 : vector<8x128xf32>
    %cst_11 = arith.constant 0.000000e+00 : f32
    %14 = vector.broadcast %cst_11 : f32 to vector<8x128xf32>
    %15 = arith.maximumf %13, %14 : vector<8x128xf32>
    %c0_12 = arith.constant 0 : index
    %c0_13 = arith.constant 0 : index
    %16 = vector.load %arg6[%c0_12, %c0_13] : memref<1x128xf32, #tpu.memory_space<vmem>>, vector<1x128xf32>
    %17 = vector.broadcast %16 : vector<1x128xf32> to vector<8x128xf32>
    %18 = arith.mulf %15, %17 : vector<8x128xf32>
    %cst_14 = arith.constant dense<0.000000e+00> : vector<8xf32>
    %19 = vector.multi_reduction <add>, %18, %cst_14 [1] : vector<8x128xf32> to vector<8xf32>
    %c0_15 = arith.constant 0 : index
    %20 = memref.load %arg7[%c0_15] : memref<1xf32, #tpu.memory_space<smem>>
    %21 = vector.broadcast %20 : f32 to vector<8xf32>
    %22 = arith.addf %19, %21 : vector<8xf32>
    %23 = vector.shape_cast %22 : vector<8xf32> to vector<1x8xf32>
    %c0_16 = arith.constant 0 : index
    %c0_17 = arith.constant 0 : index
    %24 = vector.load %arg8[%c0_16, %c0_17] : memref<1x8xf32, #tpu.memory_space<vmem>>, vector<1x8xf32>
    tpu.vector_store %arg8[%c0_16, %c0_17], %23 {strides = array<i32>} : memref<1x8xf32, #tpu.memory_space<vmem>>, vector<1x8xf32>,
    return
  }
  func.func @transform_0(%arg0: i32) -> (i32, i32) {
    %c0_i32 = arith.constant 0 : i32
    %c0_i32_0 = arith.constant 0 : i32
    return %arg0, %c0_i32 : i32, i32
  }
  func.func @transform_1(%arg0: i32) -> (i32, i32) {
    %c0_i32 = arith.constant 0 : i32
    %c0_i32_0 = arith.constant 0 : i32
    %c0_i32_1 = arith.constant 0 : i32
    return %c0_i32, %c0_i32_0 : i32, i32
  }
  func.func @transform_2(%arg0: i32) -> (i32, i32) {
    %c0_i32 = arith.constant 0 : i32
    %c0_i32_0 = arith.constant 0 : i32
    %c0_i32_1 = arith.constant 0 : i32
    return %c0_i32, %c0_i32_0 : i32, i32
  }
  func.func @transform_3(%arg0: i32) -> (i32, i32) {
    %c0_i32 = arith.constant 0 : i32
    %c0_i32_0 = arith.constant 0 : i32
    %c0_i32_1 = arith.constant 0 : i32
    return %c0_i32, %c0_i32_0 : i32, i32
  }
  func.func @transform_4(%arg0: i32) -> (i32, i32) {
    %c0_i32 = arith.constant 0 : i32
    %c0_i32_0 = arith.constant 0 : i32
    %c0_i32_1 = arith.constant 0 : i32
    return %c0_i32, %c0_i32_0 : i32, i32
  }
  func.func @transform_5(%arg0: i32) -> (i32, i32) {
    %c0_i32 = arith.constant 0 : i32
    %c0_i32_0 = arith.constant 0 : i32
    %c0_i32_1 = arith.constant 0 : i32
    return %c0_i32, %c0_i32_0 : i32, i32
  }
  func.func @transform_6(%arg0: i32) -> i32 {
    %c0_i32 = arith.constant 0 : i32
    %c0_i32_0 = arith.constant 0 : i32
    return %c0_i32 : i32
  }
  func.func @transform_7(%arg0: i32) -> (i32, i32) {
    %c0_i32 = arith.constant 0 : i32
    %c0_i32_0 = arith.constant 0 : i32
    return %c0_i32, %arg0 : i32, i32
  }
}

</mosaic_0001>

<llo_original>
// kernel: tpu_custom_call.1
$region0: #{tpu_custom_call.1}
  #allocation0 [shape = 'u32[]', space=smem, size = 0x4, offset = 0x4, fixed_abs, tag = 'smem constant byte address 0x4 - core index']
  #allocation1 [shape = 'u32[72,128]{1,0:T(1,128)}', space=vmem, size = 0x9000, scoped, tag = 'internal scratch']
  #allocation2 [shape = 'f32[1]{0:T(128)S(6)}', space=smem, size = 0x200, scoped, tag = 'scoped memory for tpu_custom_call.1']
  %s0 = inlined_call_operand.hbm [shape: bf16[8,12], index: 0, kind: input, shape index: {}]
  %s1 = inlined_call_operand.hbm [shape: bf16[12,128], index: 1, kind: input, shape index: {}]
  %s2 = inlined_call_operand.vmem [shape: f32[1,128], index: 2, kind: input, shape index: {}]
  %s3 = inlined_call_operand.hbm [shape: bf16[128,128], index: 3, kind: input, shape index: {}]
  %s4 = inlined_call_operand.vmem [shape: f32[1,128], index: 4, kind: input, shape index: {}]
  %s5 = inlined_call_operand.vmem [shape: f32[1,128], index: 5, kind: input, shape index: {}]
  %s6 = inlined_call_operand.<no memory space> [shape: f32[1], index: 6, kind: input, shape index: {}]
  %s7 = inlined_call_operand.hbm [shape: f32[1,8], index: 7, kind: output, shape index: {}]
  %s8 = sld [smem:[#allocation0]]
  $region50: #{tpu_custom_call.1} parent=0
    _
  %s10 = ssub.s32 1, %s8
  %s11 = scalar_select 0, %s10, %s8
  %12 = sst [smem:[#allocation2]] %s6
  $region1: #{tpu_custom_call.1} parent=0
    #allocation3 [shape = 'u8[2048]{0}', space=vmem, size = 0x800, scoped, tag = 'input window, operand 0, single buffered']
    #allocation4 [shape = 's32[1]{0}', space=sflag, size = 0x4, scoped, tag = 'scoped memory for tpu_custom_call.1']
    #allocation5 [shape = 's32[1]{0}', space=sflag, size = 0x4, scoped, tag = 'scoped memory for tpu_custom_call.1']
    #allocation6 [shape = 'u8[4096]{0}', space=vmem, size = 0x1000, scoped, tag = 'input window, operand 1, single buffered']
    #allocation7 [shape = 's32[1]{0}', space=sflag, size = 0x4, scoped, tag = 'scoped memory for tpu_custom_call.1']
    #allocation8 [shape = 'u8[32768]{0}', space=vmem, size = 0x8000, scoped, tag = 'input window, operand 3, single buffered']
    #allocation9 [shape = 'u8[512]{0}', space=vmem, size = 0x400, scoped, tag = 'output window, operand 0, single buffered']
    %13 = vsyncpa [#allocation4], 0
    %14 = vsyncpa [#allocation7], 0
    %15 = vsyncpa [#allocation5], 0
    // Predicated region
    $region2: #{tpu_custom_call.1} parent=1 // pred_check
      _
    $region3: #{tpu_custom_call.1} parent=1 // pred_check_branch
      %17 = sbr.rel (0) target = $region5
    $region4: #{tpu_custom_call.1} parent=1 // pred_region
      %19 = vsyncadd [#allocation4], 0
      %s21 = sshll.u32 %s0, 4
      %s22 = int_to_ptr.hbm [resolvable:$true] %s21
      %s23 = sshll.u32 [#allocation3], 4
      %s24 = int_to_ptr.vmem [resolvable:$true] %s23
      %26 = dma.hbm_to_vmem [thread:$0]  %s22, 64, %s24, [#allocation4]
    $region5: #{tpu_custom_call.1} parent=1 // pred_fallthru
      _
    // Predicated region
    $region6: #{tpu_custom_call.1} parent=1 // pred_check
      _
    $region7: #{tpu_custom_call.1} parent=1 // pred_check_branch
      %28 = sbr.rel (0) target = $region9
    $region8: #{tpu_custom_call.1} parent=1 // pred_region
      %30 = vsyncadd [#allocation7], 0
      %s31 = sshll.u32 %s1, 4
      %s32 = int_to_ptr.hbm [resolvable:$true] %s31
      %s33 = sshll.u32 [#allocation6], 4
      %s34 = int_to_ptr.vmem [resolvable:$true] %s33
      %39 = dma.hbm_to_vmem [thread:$0]  %s32, 128, %s34, [#allocation7], 64, 64, 4
    $region9: #{tpu_custom_call.1} parent=1 // pred_fallthru
      _
    // Predicated region
    $region10: #{tpu_custom_call.1} parent=1 // pred_check
      _
    $region11: #{tpu_custom_call.1} parent=1 // pred_check_branch
      %41 = sbr.rel (0) target = $region13
    $region12: #{tpu_custom_call.1} parent=1 // pred_region
      _
    $region13: #{tpu_custom_call.1} parent=1 // pred_fallthru
      _
    // Predicated region
    $region14: #{tpu_custom_call.1} parent=1 // pred_check
      _
    $region15: #{tpu_custom_call.1} parent=1 // pred_check_branch
      %43 = sbr.rel (0) target = $region17
    $region16: #{tpu_custom_call.1} parent=1 // pred_region
      %45 = vsyncadd [#allocation7], 0
      %s46 = sshll.u32 %s3, 4
      %s47 = int_to_ptr.hbm [resolvable:$true] %s46
      %s48 = sshll.u32 [#allocation8], 4
      %s49 = int_to_ptr.vmem [resolvable:$true] %s48
      %54 = dma.hbm_to_vmem [thread:$0]  %s47, 1024, %s49, [#allocation7], 64, 64, 4
    $region17: #{tpu_custom_call.1} parent=1 // pred_fallthru
      _
    // Predicated region
    $region18: #{tpu_custom_call.1} parent=1 // pred_check
      _
    $region19: #{tpu_custom_call.1} parent=1 // pred_check_branch
      %56 = sbr.rel (0) target = $region21
    $region20: #{tpu_custom_call.1} parent=1 // pred_region
      _
    $region21: #{tpu_custom_call.1} parent=1 // pred_fallthru
      _
    // Predicated region
    $region22: #{tpu_custom_call.1} parent=1 // pred_check
      _
    $region23: #{tpu_custom_call.1} parent=1 // pred_check_branch
      %58 = sbr.rel (0) target = $region25
    $region24: #{tpu_custom_call.1} parent=1 // pred_region
      _
    $region25: #{tpu_custom_call.1} parent=1 // pred_fallthru
      _
    // Predicated region
    $region26: #{tpu_custom_call.1} parent=1 // pred_check
      _
    $region27: #{tpu_custom_call.1} parent=1 // pred_check_branch
      %60 = sbr.rel (0) target = $region29
    $region28: #{tpu_custom_call.1} parent=1 // pred_region
      _
    $region29: #{tpu_custom_call.1} parent=1 // pred_fallthru
      _
    // Predicated region
    $region30: #{tpu_custom_call.1} parent=1 // pred_check
      _
    $region31: #{tpu_custom_call.1} parent=1 // pred_check_branch
      %62 = sbr.rel (0) target = $region33
    $region32: #{tpu_custom_call.1} parent=1 // pred_region
      %64 = dma.done [#allocation4], 64
    $region33: #{tpu_custom_call.1} parent=1 // pred_fallthru
      _
    // Predicated region
    $region34: #{tpu_custom_call.1} parent=1 // pred_check
      _
    $region35: #{tpu_custom_call.1} parent=1 // pred_check_branch
      %66 = sbr.rel (0) target = $region37
    $region36: #{tpu_custom_call.1} parent=1 // pred_region
      %68 = dma.done [#allocation7], 128
    $region37: #{tpu_custom_call.1} parent=1 // pred_fallthru
      _
    // Predicated region
    $region38: #{tpu_custom_call.1} parent=1 // pred_check
      _
    $region39: #{tpu_custom_call.1} parent=1 // pred_check_branch
      %70 = sbr.rel (0) target = $region41
    $region40: #{tpu_custom_call.1} parent=1 // pred_region
      %72 = dma.done [#allocation7], 1024
    $region41: #{tpu_custom_call.1} parent=1 // pred_fallthru
      _
    %v74 = vld [vmem:[#allocation3] sm:$0xf]
    %v75 = vld [vmem:[#allocation6] sm:$0xf]
    %v76 = vld [vmem:[#allocation6 + $0x4] sm:$0x3]
    %v77 = vld [vmem:[%s2] sm:$0x1]
    %v79 = vperm.slane %v77, 0
    %v83 = vunpack.c.l.b16 %v75
    %v84 = vunpack.c.l.b16 %v76
    %v85 = vpack.c.b16 %v84, %v83
    %vm86 = vcmask 97280
    %v88 = vsel %vm86, %v74, 0
    %vm90 = vcmask 1045504
    %v92 = vsel %vm90, %v85, 0
    %94 = vmatpush.bf16.msra.mxu0 0
    %95 = vmatpush.bf16.msra.mxu0 0
    %96 = vmatpush.bf16.msra.mxu0 0
    %97 = vmatpush.bf16.msra.mxu0 0
    %98 = vmatpush.bf16.msra.mxu0 0
    %99 = vmatpush.bf16.msra.mxu0 0
    %100 = vmatpush.bf16.msra.mxu0 0
    %101 = vmatpush.bf16.msra.mxu0 %v92
    %102 = vmatmul.bf16.gmra.mxu0 %v88
    %v103 = vpop.f32.mrf.mxu0
    %v104 = vadd.f32 %v79, %v103
    %v105 = vpop.f32.mrf.mxu0
    %106 = vdwg.mxu0
    %v107 = vmax.f32 %v104, 0.0
    %v108 = vpack.c.bf16 %v107, %v107
    %v109 = vld [vmem:[#allocation8] sm:$0xf]
    %v110 = vld [vmem:[#allocation8 + $0x4] sm:$0xf]
    %v111 = vld [vmem:[#allocation8 + $0x8] sm:$0xf]
    %v112 = vld [vmem:[#allocation8 + $0xc] sm:$0xf]
    %v113 = vld [vmem:[#allocation8 + $0x10] sm:$0xf]
    %v114 = vld [vmem:[#allocation8 + $0x14] sm:$0xf]
    %v115 = vld [vmem:[#allocation8 + $0x18] sm:$0xf]
    %v116 = vld [vmem:[#allocation8 + $0x1c] sm:$0xf]
    %v117 = vld [vmem:[#allocation8 + $0x20] sm:$0xf]
    %v118 = vld [vmem:[#allocation8 + $0x24] sm:$0xf]
    %v119 = vld [vmem:[#allocation8 + $0x28] sm:$0xf]
    %v120 = vld [vmem:[#allocation8 + $0x2c] sm:$0xf]
    %v121 = vld [vmem:[#allocation8 + $0x30] sm:$0xf]
    %v122 = vld [vmem:[#allocation8 + $0x34] sm:$0xf]
    %v123 = vld [vmem:[#allocation8 + $0x38] sm:$0xf]
    %v124 = vld [vmem:[#allocation8 + $0x3c] sm:$0xf]
    %v125 = vld [vmem:[%s4] sm:$0x1]
    %v127 = vperm.slane %v125, 0
    %v145 = vunpack.c.l.b16 %v109
    %v146 = vunpack.c.l.b16 %v110
    %v147 = vunpack.c.l.b16 %v111
    %v148 = vunpack.c.l.b16 %v112
    %v149 = vunpack.c.l.b16 %v113
    %v150 = vunpack.c.l.b16 %v114
    %v151 = vunpack.c.l.b16 %v115
    %v152 = vunpack.c.l.b16 %v116
    %v153 = vunpack.c.l.b16 %v117
    %v154 = vunpack.c.l.b16 %v118
    %v155 = vunpack.c.l.b16 %v119
    %v156 = vunpack.c.l.b16 %v120
    %v157 = vunpack.c.l.b16 %v121
    %v158 = vunpack.c.l.b16 %v122
    %v159 = vunpack.c.l.b16 %v123
    %v160 = vunpack.c.l.b16 %v124
    %v161 = vpack.c.b16 %v146, %v145
    %v162 = vpack.c.b16 %v148, %v147
    %v163 = vpack.c.b16 %v150, %v149
    %v164 = vpack.c.b16 %v152, %v151
    %v165 = vpack.c.b16 %v154, %v153
    %v166 = vpack.c.b16 %v156, %v155
    %v167 = vpack.c.b16 %v158, %v157
    %v168 = vpack.c.b16 %v160, %v159
    %177 = vmatpush.bf16.msra.mxu0 %v168
    %178 = vmatpush.bf16.msra.mxu0 %v167
    %179 = vmatpush.bf16.msra.mxu0 %v166
    %180 = vmatpush.bf16.msra.mxu0 %v165
    %181 = vmatpush.bf16.msra.mxu0 %v164
    %182 = vmatpush.bf16.msra.mxu0 %v163
    %183 = vmatpush.bf16.msra.mxu0 %v162
    %184 = vmatpush.bf16.msra.mxu0 %v161
    %185 = vmatmul.bf16.gmra.mxu0 %v108
    %v186 = vpop.f32.mrf.mxu0
    %v187 = vadd.f32 %v127, %v186
    %v188 = vpop.f32.mrf.mxu0
    %189 = vdwg.mxu0
    %v190 = vmax.f32 %v187, 0.0
    %v191 = vld [vmem:[%s5] sm:$0x1]
    %v193 = vperm.slane %v191, 0
    %v195 = vmul.f32 %v190, %v193
    %196 = vadd.xlane.f32.xlu0 %v195
    %v197 = vpop.xlane.xlu0 %196
    %s198 = sld [smem:[#allocation2]]
    %v199 = vstv %s198
    %v200 = vadd.f32 %v197, %v199
    %v202 = vlaneseq
    %v203 = vand.u32 %v202, 127
    %v204 = vperm.slane %v200, %v203
    %vm206 = vcmask 57344
    %207 = vst.msk [vmem:[#allocation9] sm:$0x1] %vm206, %v204
    // Predicated region
    $region42: #{tpu_custom_call.1} parent=1 // pred_check
      _
    $region43: #{tpu_custom_call.1} parent=1 // pred_check_branch
      %209 = sbr.rel (0) target = $region45
    $region44: #{tpu_custom_call.1} parent=1 // pred_region
      %211 = vsyncadd [#allocation5], 0
      %s213 = sshll.u32 [#allocation9], 4
      %s214 = int_to_ptr.vmem [resolvable:$true] %s213
      %s215 = sshll.u32 %s7, 4
      %s216 = int_to_ptr.hbm [resolvable:$true] %s215
      %218 = dma.vmem_to_hbm [thread:$0]  %s214, 16, %s216, [#allocation5]
    $region45: #{tpu_custom_call.1} parent=1 // pred_fallthru
      _
    // Predicated region
    $region46: #{tpu_custom_call.1} parent=1 // pred_check
      _
    $region47: #{tpu_custom_call.1} parent=1 // pred_check_branch
      %220 = sbr.rel (0) target = $region49
    $region48: #{tpu_custom_call.1} parent=1 // pred_region
      %222 = dma.done [#allocation5], 16
    $region49: #{tpu_custom_call.1} parent=1 // pred_fallthru
      _
    %223 = vsyncpa [#allocation4], 1
    %224 = vsyncpa [#allocation7], 1
    %225 = vsyncpa [#allocation5], 1

</llo_original>
